<compile_context>
chip_gen: v7x
topology: tpu7x:2x2x1
jax: 0.10.0
libtpu: 0.0.40
codegen_flags: <defaults>
</compile_context>

<pallas_src>
import jax
import jax.numpy as jnp
from jax.experimental import pallas as pl
from jax.experimental.pallas import tpu as pltpu


def _round_up(x: int, m: int) -> int:
    return ((x + m - 1) // m) * m


def _predictor_kernel(x_ref, w_ref, b_ref, o_ref):
    # Linear: (tm, D) @ (D, O_pad) + (1, O_pad), f32 MXU accumulation.
    logits = jnp.dot(x_ref[...], w_ref[...], preferred_element_type=jnp.float32)
    logits = logits + b_ref[...]  # broadcast (1, O_pad) over rows

    # Numerically stable softmax along the last axis (== torch dim=1 for 2-D x).
    # Padded columns carry bias = -1e30 => exp underflows to exactly 0.
    m = jnp.max(logits, axis=-1, keepdims=True)
    e = jnp.exp(logits - m)
    denom = jnp.sum(e, axis=-1, keepdims=True)
    o_ref[...] = (e * pl.reciprocal(denom, approx=False)).astype(o_ref.dtype)


def simple_predictor_forward(x, w_t, b, *, tm=None, vmem_limit_bytes=64 * 1024 * 1024):
    """Forward pass of SimplePredictor.

    x:   (B, D) f32
    w_t: (D, O) f32 -- transposed nn.Linear weight, so x @ w_t + b == Linear(x)
    b:   (O,)   f32
    returns softmax(x @ w_t + b, axis=1) with shape (B, O), f32.
    """
    x = jnp.asarray(x, jnp.float32)
    w_t = jnp.asarray(w_t, jnp.float32)
    b = jnp.asarray(b, jnp.float32)

    B, D = x.shape
    O = w_t.shape[1]

    # --- Lane-dense output: pad output dim to a multiple of 128. ---
    O_pad = max(128, _round_up(O, 128))
    w_p = jnp.pad(w_t, ((0, 0), (0, O_pad - O)))
    b_p = jnp.pad(b, (0, O_pad - O), constant_values=-1e30).reshape(1, O_pad)

    # --- Pick batch tile: largest multiple of 8 under a VMEM budget (leave
    #     headroom below vmem_limit_bytes for pipeline / compiler scratch). ---
    if tm is None:
        budget = 24 * 1024 * 1024
        resident = D * O_pad * 4 + O_pad * 4          # resident weight + bias
        per_row = 2 * (D + O_pad) * 4                 # double-buffered x + out tile rows
        fit = max(8, ((budget - resident) // per_row) // 8 * 8)
        tm = min(1024, fit, _round_up(B, 8))
    tm = max(8, (tm // 8) * 8)

    # --- Pad batch so the grid divides evenly (padded rows are sliced off). ---
    B_pad = _round_up(B, tm)
    if B_pad != B:
        x = jnp.pad(x, ((0, B_pad - B), (0, 0)))

    out = pl.pallas_call(
        _predictor_kernel,
        out_shape=jax.ShapeDtypeStruct((B_pad, O_pad), jnp.float32),
        grid=(B_pad // tm,),
        in_specs=[
            pl.BlockSpec((tm, D), lambda i: (i, 0)),      # x: streamed per batch tile
            pl.BlockSpec((D, O_pad), lambda i: (0, 0)),   # W: VMEM-resident across grid
            pl.BlockSpec((1, O_pad), lambda i: (0, 0)),   # b: VMEM-resident across grid
        ],
        out_specs=pl.BlockSpec((tm, O_pad), lambda i: (i, 0)),
        compiler_params=pltpu.CompilerParams(
            dimension_semantics=("parallel",),            # independent batch tiles
            vmem_limit_bytes=vmem_limit_bytes,
        ),
    )(x, w_p, b_p)

    return out[:B, :O]


if __name__ == "__main__":
    # Small shapes implied by the module: x is (batch_size, input_dim).
    batch, input_dim, output_dim = 8, 32, 16

    key = jax.random.PRNGKey(0)
    kx, kw, kb = jax.random.split(key, 3)

    x = jax.random.normal(kx, (batch, input_dim), dtype=jnp.float32)
    # Deterministic init mimicking nn.Linear's uniform(-1/sqrt(D), 1/sqrt(D)).
    bound = 1.0 / jnp.sqrt(jnp.float32(input_dim))
    w = jax.random.uniform(kw, (output_dim, input_dim), dtype=jnp.float32,
                           minval=-bound, maxval=bound)
    b = jax.random.uniform(kb, (output_dim,), dtype=jnp.float32,
                           minval=-bound, maxval=bound)

    out = simple_predictor_forward(x, w.T, b)
    jax.block_until_ready(out)

    # Reference check (plain JAX) for sanity.
    ref = jax.nn.softmax(x @ w.T + b, axis=1)
    assert out.shape == (batch, output_dim)
    assert jnp.allclose(out, ref, atol=1e-5, rtol=1e-5)
    assert jnp.allclose(jnp.sum(out, axis=1), 1.0, atol=1e-5)

    print("KERNEL_OK")
</pallas_src>

<mosaic_0001>
module attributes {stable_mosaic.version = 11 : i64} {
  func.func @_predictor_kernel(%arg0: i32, %arg1: memref<8x32xf32, #tpu.memory_space<vmem>>, %arg2: memref<32x128xf32, #tpu.memory_space<vmem>>, %arg3: memref<1x128xf32, #tpu.memory_space<vmem>>, %arg4: memref<8x128xf32, #tpu.memory_space<vmem>>) attributes {dimension_semantics = [#tpu.dimension_semantics<parallel>], iteration_bounds = array<i64: 1>, scalar_prefetch = 0 : i64, scratch_operands = 0 : i64, tpu.core_type = #tpu.core_type<tc>, window_params = [{transform_indices = @transform_0, window_bounds = array<i64: 8, 32>}, {pipeline_mode = #tpu.pipeline_mode<synchronous>, transform_indices = @transform_1, window_bounds = array<i64: 32, 128>}, {pipeline_mode = #tpu.pipeline_mode<synchronous>, transform_indices = @transform_2, window_bounds = array<i64: 1, 128>}, {transform_indices = @transform_3, window_bounds = array<i64: 8, 128>}]} {
    %c0 = arith.constant 0 : index
    %c0_0 = arith.constant 0 : index
    %0 = vector.load %arg1[%c0, %c0_0] : memref<8x32xf32, #tpu.memory_space<vmem>>, vector<8x32xf32>
    %c0_1 = arith.constant 0 : index
    %c0_2 = arith.constant 0 : index
    %1 = vector.load %arg2[%c0_1, %c0_2] : memref<32x128xf32, #tpu.memory_space<vmem>>, vector<32x128xf32>
    %cst = arith.constant dense<0.000000e+00> : vector<8x128xf32>
    %2 = tpu.matmul %0, %1, %cst {dimension_numbers = #tpu.dot_dimension_numbers<[1], [0], [0], [1], [0, 0, 1, 1], [], []>} : vector<8x32xf32>, vector<32x128xf32>, vector<8x128xf32> -> vector<8x128xf32>
    %c0_3 = arith.constant 0 : index
    %c0_4 = arith.constant 0 : index
    %3 = vector.load %arg3[%c0_3, %c0_4] : memref<1x128xf32, #tpu.memory_space<vmem>>, vector<1x128xf32>
    %4 = vector.broadcast %3 : vector<1x128xf32> to vector<8x128xf32>
    %5 = arith.addf %2, %4 : vector<8x128xf32>
    %cst_5 = arith.constant dense<0xFF800000> : vector<8xf32>
    %6 = vector.multi_reduction <maximumf>, %5, %cst_5 [1] : vector<8x128xf32> to vector<8xf32>
    %7 = vector.shape_cast %6 : vector<8xf32> to vector<8x1xf32>
    %8 = vector.broadcast %7 : vector<8x1xf32> to vector<8x128xf32>
    %9 = arith.subf %5, %8 : vector<8x128xf32>
    %10 = math.exp %9 : vector<8x128xf32>
    %cst_6 = arith.constant dense<0.000000e+00> : vector<8xf32>
    %11 = vector.multi_reduction <add>, %10, %cst_6 [1] : vector<8x128xf32> to vector<8xf32>
    %12 = vector.shape_cast %11 : vector<8xf32> to vector<8x1xf32>
    %13 = tpu.reciprocal %12 : vector<8x1xf32> -> vector<8x1xf32>
    %14 = vector.broadcast %13 : vector<8x1xf32> to vector<8x128xf32>
    %15 = arith.mulf %10, %14 : vector<8x128xf32>
    %c0_7 = arith.constant 0 : index
    %c0_8 = arith.constant 0 : index
    %16 = vector.load %arg4[%c0_7, %c0_8] : memref<8x128xf32, #tpu.memory_space<vmem>>, vector<8x128xf32>
    tpu.vector_store %arg4[%c0_7, %c0_8], %15 {strides = array<i32>} : memref<8x128xf32, #tpu.memory_space<vmem>>, vector<8x128xf32>,
    return
  }
  func.func @transform_0(%arg0: i32) -> (i32, i32) {
    %c0_i32 = arith.constant 0 : i32
    %c0_i32_0 = arith.constant 0 : i32
    return %arg0, %c0_i32 : i32, i32
  }
  func.func @transform_1(%arg0: i32) -> (i32, i32) {
    %c0_i32 = arith.constant 0 : i32
    %c0_i32_0 = arith.constant 0 : i32
    %c0_i32_1 = arith.constant 0 : i32
    return %c0_i32, %c0_i32_0 : i32, i32
  }
  func.func @transform_2(%arg0: i32) -> (i32, i32) {
    %c0_i32 = arith.constant 0 : i32
    %c0_i32_0 = arith.constant 0 : i32
    %c0_i32_1 = arith.constant 0 : i32
    return %c0_i32, %c0_i32_0 : i32, i32
  }
  func.func @transform_3(%arg0: i32) -> (i32, i32) {
    %c0_i32 = arith.constant 0 : i32
    %c0_i32_0 = arith.constant 0 : i32
    return %arg0, %c0_i32 : i32, i32
  }
}

</mosaic_0001>

<llo_original>
// kernel: tpu_custom_call.1
$region0: #{tpu_custom_call.1}
  #allocation0 [shape = 'u32[]', space=smem, size = 0x4, offset = 0x4, fixed_abs, tag = 'smem constant byte address 0x4 - core index']
  #allocation1 [shape = 'u32[144,128]{1,0:T(1,128)}', space=vmem, size = 0x12000, scoped, tag = 'internal scratch']
  %s0 = inlined_call_operand.hbm [shape: f32[8,32], index: 0, kind: input, shape index: {}]
  %s1 = inlined_call_operand.hbm [shape: f32[32,128], index: 1, kind: input, shape index: {}]
  %s2 = inlined_call_operand.hbm [shape: f32[1,128], index: 2, kind: input, shape index: {}]
  %s3 = inlined_call_operand.hbm [shape: f32[8,128], index: 3, kind: output, shape index: {}]
  %s4 = sld [smem:[#allocation0]]
  $region34: #{tpu_custom_call.1} parent=0
    _
  %s6 = ssub.s32 1, %s4
  %s7 = scalar_select 0, %s6, %s4
  $region1: #{tpu_custom_call.1} parent=0
    #allocation2 [shape = 'u8[4096]{0}', space=vmem, size = 0x1000, scoped, tag = 'input window, operand 0, single buffered']
    #allocation3 [shape = 's32[1]{0}', space=sflag, size = 0x4, scoped, tag = 'scoped memory for tpu_custom_call.1']
    #allocation4 [shape = 's32[1]{0}', space=sflag, size = 0x4, scoped, tag = 'scoped memory for tpu_custom_call.1']
    #allocation5 [shape = 'u8[16384]{0}', space=vmem, size = 0x4000, scoped, tag = 'input window, operand 1, single buffered']
    #allocation6 [shape = 's32[1]{0}', space=sflag, size = 0x4, scoped, tag = 'scoped memory for tpu_custom_call.1']
    #allocation7 [shape = 'u8[512]{0}', space=vmem, size = 0x400, scoped, tag = 'input window, operand 2, single buffered']
    #allocation8 [shape = 'u8[4096]{0}', space=vmem, size = 0x1000, scoped, tag = 'output window, operand 0, single buffered']
    %8 = vsyncpa [#allocation3], 0
    %9 = vsyncpa [#allocation6], 0
    %10 = vsyncpa [#allocation4], 0
    // Predicated region
    $region2: #{tpu_custom_call.1} parent=1 // pred_check
      _
    $region3: #{tpu_custom_call.1} parent=1 // pred_check_branch
      %12 = sbr.rel (0) target = $region5
    $region4: #{tpu_custom_call.1} parent=1 // pred_region
      %s14 = ssub.s32 128, 128
      %15 = vsyncadd [#allocation3], %s14
      %s17 = sshll.u32 [#allocation2], 4
      %s18 = int_to_ptr.vmem [resolvable:$true] %s17
      %20 = dma.hbm_to_vmem [thread:$0]  %s0, 128, %s18, [#allocation3]
    $region5: #{tpu_custom_call.1} parent=1 // pred_fallthru
      _
    // Predicated region
    $region6: #{tpu_custom_call.1} parent=1 // pred_check
      _
    $region7: #{tpu_custom_call.1} parent=1 // pred_check_branch
      %22 = sbr.rel (0) target = $region9
    $region8: #{tpu_custom_call.1} parent=1 // pred_region
      %s24 = ssub.s32 512, 512
      %25 = vsyncadd [#allocation6], %s24
      %s26 = sshll.u32 [#allocation5], 4
      %s27 = int_to_ptr.vmem [resolvable:$true] %s26
      %32 = dma.hbm_to_vmem [thread:$0]  %s1, 512, %s27, [#allocation6], 128, 128, 8
    $region9: #{tpu_custom_call.1} parent=1 // pred_fallthru
      _
    // Predicated region
    $region10: #{tpu_custom_call.1} parent=1 // pred_check
      _
    $region11: #{tpu_custom_call.1} parent=1 // pred_check_branch
      %34 = sbr.rel (0) target = $region13
    $region12: #{tpu_custom_call.1} parent=1 // pred_region
      %s36 = ssub.s32 16, 16
      %37 = vsyncadd [#allocation6], %s36
      %s39 = sshll.u32 [#allocation7], 4
      %s40 = int_to_ptr.vmem [resolvable:$true] %s39
      %42 = dma.hbm_to_vmem [thread:$0]  %s2, 16, %s40, [#allocation6]
    $region13: #{tpu_custom_call.1} parent=1 // pred_fallthru
      _
    // Predicated region
    $region14: #{tpu_custom_call.1} parent=1 // pred_check
      _
    $region15: #{tpu_custom_call.1} parent=1 // pred_check_branch
      %44 = sbr.rel (0) target = $region17
    $region16: #{tpu_custom_call.1} parent=1 // pred_region
      %45 = dma.done [#allocation3], 128
    $region17: #{tpu_custom_call.1} parent=1 // pred_fallthru
      _
    // Predicated region
    $region18: #{tpu_custom_call.1} parent=1 // pred_check
      _
    $region19: #{tpu_custom_call.1} parent=1 // pred_check_branch
      %47 = sbr.rel (0) target = $region21
    $region20: #{tpu_custom_call.1} parent=1 // pred_region
      %48 = dma.done [#allocation6], 512
    $region21: #{tpu_custom_call.1} parent=1 // pred_fallthru
      _
    // Predicated region
    $region22: #{tpu_custom_call.1} parent=1 // pred_check
      _
    $region23: #{tpu_custom_call.1} parent=1 // pred_check_branch
      %50 = sbr.rel (0) target = $region25
    $region24: #{tpu_custom_call.1} parent=1 // pred_region
      %51 = dma.done [#allocation6], 16
    $region25: #{tpu_custom_call.1} parent=1 // pred_fallthru
      _
    %v52 = vld [vmem:[#allocation2] sm:$0xff]
    %v53 = vld [vmem:[#allocation5] sm:$0xff]
    %v54 = vld [vmem:[#allocation5 + $0x8] sm:$0xff]
    %v55 = vld [vmem:[#allocation5 + $0x10] sm:$0xff]
    %v56 = vld [vmem:[#allocation5 + $0x18] sm:$0xff]
    %v57 = vld [vmem:[#allocation7] sm:$0x1]
    %v59 = vlaneseq
    %v60 = vshrl.u32 %v59, 7
    %v61 = vsub.s32 0, %v60
    %v62 = vrot.slane %v57, %v61
    %vm64 = vcmask 261120
    %v66 = vsel %vm64, %v52, 0
    %68 = vmatprep.subr.mxu0 0.0
    %69 = vmatpush1.msra.mxu0 %v53
    %70 = vmatprep.subr.mxu0 0.0
    %71 = vmatpush1.msra.mxu0 %v54
    %72 = vmatprep.subr.mxu0 0.0
    %73 = vmatpush1.msra.mxu0 %v55
    %74 = vmatprep.subr.mxu0 0.0
    %75 = vmatpush1.msra.mxu0 %v56
    %76 = vmatprep.subr.mxu0 0.0
    %77 = vmatpush1.msra.mxu0 0.0
    %78 = vmatprep.subr.mxu0 0.0
    %79 = vmatpush1.msra.mxu0 0.0
    %80 = vmatprep.subr.mxu0 0.0
    %81 = vmatpush1.msra.mxu0 0.0
    %82 = vmatprep.subr.mxu0 0.0
    %83 = vmatpush1.msra.mxu0 0.0
    %84 = vmatprep.subr.mxu0 0.0
    %85 = vmatpush1.msra.mxu0 0.0
    %86 = vmatprep.subr.mxu0 0.0
    %87 = vmatpush1.msra.mxu0 0.0
    %88 = vmatprep.subr.mxu0 0.0
    %89 = vmatpush1.msra.mxu0 0.0
    %90 = vmatprep.subr.mxu0 0.0
    %91 = vmatpush1.msra.mxu0 0.0
    %92 = vmatprep.subr.mxu0 0.0
    %93 = vmatpush1.msra.mxu0 0.0
    %94 = vmatprep.subr.mxu0 0.0
    %95 = vmatpush1.msra.mxu0 0.0
    %96 = vmatprep.subr.mxu0 0.0
    %97 = vmatpush1.msra.mxu0 0.0
    %98 = vmatprep.subr.mxu0 0.0
    %99 = vmatpush1.msra.mxu0 0.0
    %100 = vmatprep.subr.mxu0 0.0
    %101 = vmatpush1.msra.mxu0 0.0
    %102 = vmatprep.subr.mxu0 0.0
    %103 = vmatpush1.msra.mxu0 0.0
    %104 = vmatprep.subr.mxu0 0.0
    %105 = vmatpush1.msra.mxu0 0.0
    %106 = vmatprep.subr.mxu0 0.0
    %107 = vmatpush1.msra.mxu0 0.0
    %108 = vmatprep.subr.mxu0 0.0
    %109 = vmatpush1.msra.mxu0 0.0
    %110 = vmatprep.subr.mxu0 0.0
    %111 = vmatpush1.msra.mxu0 0.0
    %112 = vmatprep.subr.mxu0 0.0
    %113 = vmatpush1.msra.mxu0 0.0
    %114 = vmatprep.subr.mxu0 0.0
    %115 = vmatpush1.msra.mxu0 0.0
    %116 = vmatprep.subr.mxu0 0.0
    %117 = vmatpush1.msra.mxu0 0.0
    %118 = vmatprep.subr.mxu0 0.0
    %119 = vmatpush1.msra.mxu0 0.0
    %120 = vmatprep.subr.mxu0 0.0
    %121 = vmatpush1.msra.mxu0 0.0
    %122 = vmatprep.subr.mxu0 0.0
    %123 = vmatpush1.msra.mxu0 0.0
    %124 = vmatprep.subr.mxu0 0.0
    %125 = vmatpush1.msra.mxu0 0.0
    %126 = vmatprep.subr.mxu0 0.0
    %127 = vmatpush1.msra.mxu0 0.0
    %128 = vmatprep.subr.mxu0 0.0
    %129 = vmatpush1.msra.mxu0 0.0
    %130 = vmatprep.subr.mxu0 0.0
    %131 = vmatpush1.msra.mxu0 0.0
    %132 = vmatprep.mubr.f32.mxu0 0.0
    %133 = vmatmul.mubr.f32.gmra.mrb[0].mxu0 %v66
    %v134 = vpop.f32.mrb[0].mxu0
    %v135 = vadd.f32 %v62, %v134
    %v136 = vpop.f32.mrb[0].mxu0
    %137 = vdwg.mxu0
    %138 = vmax.xlane.f32.xlu0 %v135
    %v139 = vpop.xlane.xlu0 %138
    %v140 = vsub.f32 %v135, %v139
    %v141 = vmul.f32 %v140, 1.442695
    %v142 = vpow.pop %v141
    %143 = vadd.xlane.f32.xlu0 %v142
    %v144 = vpop.xlane.xlu0 %143
    %v145 = vrcp.pop %v144
    %v146 = vmul.f32 %v142, %v145
    %147 = vst [vmem:[#allocation8] sm:$0xff] %v146
    // Predicated region
    $region26: #{tpu_custom_call.1} parent=1 // pred_check
      _
    $region27: #{tpu_custom_call.1} parent=1 // pred_check_branch
      %149 = sbr.rel (0) target = $region29
    $region28: #{tpu_custom_call.1} parent=1 // pred_region
      %s151 = ssub.s32 128, 128
      %152 = vsyncadd [#allocation4], %s151
      %s154 = sshll.u32 [#allocation8], 4
      %s155 = int_to_ptr.vmem [resolvable:$true] %s154
      %157 = dma.vmem_to_hbm [thread:$0]  %s155, 128, %s3, [#allocation4]
    $region29: #{tpu_custom_call.1} parent=1 // pred_fallthru
      _
    // Predicated region
    $region30: #{tpu_custom_call.1} parent=1 // pred_check
      _
    $region31: #{tpu_custom_call.1} parent=1 // pred_check_branch
      %159 = sbr.rel (0) target = $region33
    $region32: #{tpu_custom_call.1} parent=1 // pred_region
      %160 = dma.done [#allocation4], 128
    $region33: #{tpu_custom_call.1} parent=1 // pred_fallthru
      _
    %161 = vsyncpa [#allocation3], 1
    %162 = vsyncpa [#allocation6], 1
    %163 = vsyncpa [#allocation4], 1

</llo_original>
